<compile_context>
chip_gen: v7x
topology: tpu7x:2x2x1
jax: 0.10.0
libtpu: 0.0.40
codegen_flags: <defaults>
</compile_context>

<pallas_src>
import math
import functools
import numpy as np
import jax
import jax.numpy as jnp
from jax.experimental import pallas as pl
from jax.experimental.pallas import tpu as pltpu


# ----------------------------------------------------------------------------------
# host-side filter design (numpy, no scipy)
# ----------------------------------------------------------------------------------
def _kaiser_atten(numtaps, width_norm):
    return 2.285 * (numtaps - 1) * np.pi * width_norm + 7.95


def _kaiser_beta(a):
    if a > 50:
        return 0.1102 * (a - 8.7)
    if a > 21:
        return 0.5842 * (a - 21) ** 0.4 + 0.07886 * (a - 21)
    return 0.0


def _firwin_kaiser(numtaps, cutoff, width, fs):
    nyq = fs / 2.0
    c = cutoff / nyq
    beta = _kaiser_beta(_kaiser_atten(numtaps, width / nyq))
    m = np.arange(numtaps) - (numtaps - 1) / 2.0
    h = c * np.sinc(c * m)
    h = h * np.kaiser(numtaps, beta)
    h = h / np.sum(h)
    return h.astype(np.float64)


def _bessel_j1(x):
    x = np.asarray(x, dtype=np.float64)
    ax = np.abs(x)
    safe = np.where(ax == 0.0, 1.0, ax)
    y = x * x
    p1 = x * (72362614232.0 + y * (-7895059235.0 + y * (242396853.1 + y * (-2972611.439
         + y * (15704.48260 + y * (-30.16036606))))))
    q1 = 144725228442.0 + y * (2300535178.0 + y * (18583304.74 + y * (99447.43394
         + y * (376.9991397 + y))))
    small = p1 / q1
    z = 8.0 / safe
    y2 = z * z
    xx = ax - 2.356194491
    p2 = 1.0 + y2 * (0.183105e-2 + y2 * (-0.3516396496e-4 + y2 * (0.2457520174e-5
         + y2 * (-0.240337019e-6))))
    q2 = 0.04687499995 + y2 * (-0.2002690873e-3 + y2 * (0.8449199096e-5
         + y2 * (-0.88228987e-6 + y2 * 0.105787412e-6)))
    large = np.sqrt(0.636619772 / safe) * (np.cos(xx) * p2 - z * np.sin(xx) * q2) * np.sign(x)
    return np.where(ax < 8.0, small, large)


def design_filter(numtaps, cutoff, width, fs, radial=False):
    assert numtaps >= 1
    if numtaps == 1:
        return None
    if not radial:
        return _firwin_kaiser(numtaps, cutoff, width, fs)
    x = (np.arange(numtaps) - (numtaps - 1) / 2.0) / fs
    r = np.hypot(*np.meshgrid(x, x))
    rr = np.where(r == 0.0, 1.0, r)
    f = np.where(r == 0.0, cutoff, _bessel_j1(2 * cutoff * (np.pi * rr)) / (np.pi * rr))
    beta = _kaiser_beta(_kaiser_atten(numtaps, width / (fs / 2.0)))
    w = np.kaiser(numtaps, beta)
    f = f * np.outer(w, w)
    f = f / np.sum(f)
    return f.astype(np.float64)


def get_layer_params(image_size, num_layers, channels, max_channels=512, image_channels=3,
                     margin_size=10, first_cutoff=2, first_stopband=2 ** 2.1,
                     last_stopband_rel=2 ** 0.3, num_critical=2):
    last_cutoff = image_size / 2
    last_stopband = last_cutoff * last_stopband_rel
    exponents = np.minimum(np.arange(num_layers + 1) / (num_layers - num_critical), 1)
    cutoffs = first_cutoff * (last_cutoff / first_cutoff) ** exponents
    stopbands = first_stopband * (last_stopband / first_stopband) ** exponents
    sampling_rates = np.exp2(np.ceil(np.log2(np.minimum(stopbands * 2, image_size))))
    half_widths = np.maximum(stopbands, sampling_rates / 2) - cutoffs
    sizes = sampling_rates + margin_size * 2
    sizes[-2:] = image_size
    channels = np.rint(np.minimum(channels / 2 / cutoffs, max_channels))
    channels[-1] = image_channels
    return channels, sizes, sampling_rates, cutoffs, half_widths


# ----------------------------------------------------------------------------------
# upfirdn -> linear-operator matrices (host-side, exact linear-algebra rewrite of
# the torch upfirdn2d reference: zero-insert, pad/crop, correlate with flipped
# filter, stride)
# ----------------------------------------------------------------------------------
def _upfirdn1d_matrix(n_in, f1d, up, down, pad0, pad1, axis_gain):
    f = np.asarray(f1d, dtype=np.float64) * axis_gain
    feff = f[::-1]                       # filter is flipped (flip_filter=False in ref)
    taps = feff.shape[0]
    n_up = n_in * up
    Z = np.zeros((n_up, n_in), dtype=np.float64)
    Z[np.arange(n_in) * up, np.arange(n_in)] = 1.0
    top = np.zeros((max(pad0, 0), n_in))
    bot = np.zeros((max(pad1, 0), n_in))
    Zp = np.concatenate([top, Z, bot], axis=0)
    Zp = Zp[max(-pad0, 0): Zp.shape[0] - max(-pad1, 0)]
    n_conv = Zp.shape[0] - taps + 1
    M = np.zeros((n_conv, n_in), dtype=np.float64)
    for t in range(taps):
        M += feff[t] * Zp[t:t + n_conv]
    return M[::down]


def _downfir2d_matrices(h_in, w_in, f2d, down):
    # out = sum_t  A[t] @ y @ B[t]   reproduces the non-separable (radial) down-FIR + stride
    feff = np.asarray(f2d, dtype=np.float64)[::-1, ::-1]
    T = feff.shape[0]
    hc, wc = h_in - T + 1, w_in - T + 1
    ho, wo = (hc - 1) // down + 1, (wc - 1) // down + 1
    A = np.zeros((T, ho, h_in))
    Bt = np.zeros((T, w_in, wo))
    for ti in range(T):
        for i in range(ho):
            A[ti, i, i * down + ti] = 1.0
        for tj in range(T):
            for j in range(wo):
                Bt[ti, j * down + tj, j] = feff[ti, tj]
    return A, Bt


def _pick_cblk(C, cap=16):
    """largest divisor of C that is <= cap."""
    for d in range(min(C, cap), 0, -1):
        if C % d == 0:
            return d
    return 1


# ----------------------------------------------------------------------------------
# Pallas kernels
# ----------------------------------------------------------------------------------
def _linear_kernel(x_ref, w_ref, b_ref, o_ref):
    o_ref[...] = jnp.dot(x_ref[...], w_ref[...],
                         preferred_element_type=jnp.float32) + b_ref[...]


def pallas_linear(x, w_t, b):
    """y = x @ w_t + b   (w_t already scaled/transposed)."""
    B, _ = x.shape
    O = w_t.shape[1]
    return pl.pallas_call(
        _linear_kernel,
        out_shape=jax.ShapeDtypeStruct((B, O), jnp.float32),
    )(x.astype(jnp.float32), w_t.astype(jnp.float32), b.reshape(1, O).astype(jnp.float32))


def _bmm_kernel(p_ref, w_ref, o_ref):
    o_ref[...] = jnp.dot(p_ref[...], w_ref[...], preferred_element_type=jnp.float32)


def pallas_bmm_tiled(p, w):
    """(B, M, K) @ (B, K, N) -> (B, M, N) f32, tiled over M, bf16 MXU inputs."""
    B, M, K = p.shape
    N = w.shape[2]
    tm = 512 if M >= 512 else ((M + 7) // 8) * 8
    Mp = ((M + tm - 1) // tm) * tm
    if Mp != M:
        p = jnp.pad(p, ((0, 0), (0, Mp - M), (0, 0)))
    p = p.astype(jnp.bfloat16)
    w = w.astype(jnp.bfloat16)
    out = pl.pallas_call(
        _bmm_kernel,
        out_shape=jax.ShapeDtypeStruct((B, Mp, N), jnp.float32),
        grid=(B, Mp // tm),
        in_specs=[pl.BlockSpec((None, tm, K), lambda b, m: (b, m, 0)),
                  pl.BlockSpec((None, K, N), lambda b, m: (b, 0, 0))],
        out_specs=pl.BlockSpec((None, tm, N), lambda b, m: (b, m, 0)),
        compiler_params=pltpu.CompilerParams(
            dimension_semantics=("parallel", "parallel")),
    )(p, w)
    return out[:, :M, :]


def _fourier_kernel(coords_ref, f_ref, ph_ref, amp_ref, w_ref, o_ref):
    # coords @ freqs^T with K=2 done on the VPU (broadcast mul-adds), MXU only for CxC proj.
    cx = coords_ref[:, 0:1]                       # (HW, 1)
    cy = coords_ref[:, 1:2]
    fx = f_ref[0:1, :]                            # (1, C)
    fy = f_ref[1:2, :]
    x = cx * fx + cy * fy + ph_ref[...]           # (HW, C)
    x = jnp.sin(x * (2.0 * np.pi)) * amp_ref[...]
    o_ref[...] = jnp.dot(x, w_ref[...], preferred_element_type=jnp.float32)


def pallas_fourier(coords, freqs_bc, phases, amp, weight_t):
    HW = coords.shape[0]
    B = freqs_bc.shape[0]
    C = weight_t.shape[0]
    return pl.pallas_call(
        _fourier_kernel,
        out_shape=jax.ShapeDtypeStruct((B, HW, C), jnp.float32),
        grid=(B,),
        in_specs=[pl.BlockSpec((HW, 2), lambda b: (0, 0)),
                  pl.BlockSpec((None, 2, C), lambda b: (b, 0, 0)),
                  pl.BlockSpec((None, 1, C), lambda b: (b, 0, 0)),
                  pl.BlockSpec((None, 1, C), lambda b: (b, 0, 0)),
                  pl.BlockSpec((C, C), lambda b: (0, 0))],
        out_specs=pl.BlockSpec((None, HW, C), lambda b: (b, 0, 0)),
        compiler_params=pltpu.CompilerParams(dimension_semantics=("parallel",)),
    )(coords, freqs_bc, phases, amp, weight_t)


def _flrelu_kernel(bias_ref, x_ref, uh_ref, uwT_ref, dhs_ref, dwT_ref, o_ref, *,
                   slope, gain, clamp, taps, ho, hop):
    cb, hc, wc = x_ref.shape
    hu = uh_ref.shape[0]
    wu = uwT_ref.shape[1]
    wo = dwT_ref.shape[2]

    z = x_ref[...] + bias_ref[...]                                   # (Cb, Hc, Wc)

    # --- up-FIR: channel-batched matmuls (W-axis then H-axis) ---
    uwT_b = jnp.broadcast_to(uwT_ref[...][None], (cb, wc, wu))
    t = jnp.einsum('chw,cwk->chk', z, uwT_b,
                   preferred_element_type=jnp.float32)               # (Cb, Hc, Wu)
    uh_b = jnp.broadcast_to(uh_ref[...][None], (cb, hu, hc))
    y = jnp.einsum('cij,cjw->ciw', uh_b, t,
                   preferred_element_type=jnp.float32)               # (Cb, Hu, Wu)

    # --- fused leaky-relu / gain / clamp (f32 VPU) ---
    y = jnp.where(y >= 0.0, y, y * slope) * gain
    y = jnp.clip(y, -clamp, clamp)

    # --- down-FIR: one stacked H-side matmul + T W-side matmuls ---
    dhs_b = jnp.broadcast_to(dhs_ref[...][None], (cb, taps * hop, hu))
    a = jnp.einsum('cij,cjw->ciw', dhs_b, y,
                   preferred_element_type=jnp.float32)               # (Cb, T*Hop, Wu)
    acc = jnp.zeros((cb, hop, wo), jnp.float32)
    for ti in range(taps):
        a_t = a[:, ti * hop:(ti + 1) * hop, :]                       # aligned slice
        dw_b = jnp.broadcast_to(dwT_ref[ti][None], (cb, wu, wo))
        acc = acc + jnp.einsum('chw,cwj->chj', a_t, dw_b,
                               preferred_element_type=jnp.float32)
    o_ref[...] = acc[:, :ho, :]


def pallas_filtered_lrelu(x, bias, uh, uwT, dh_stack, dwT, slope, gain, clamp, ho):
    B, C, Hc, Wc = x.shape
    Hu = uh.shape[0]
    Wu = uwT.shape[1]
    T, _, Wo = dwT.shape
    Hop = dh_stack.shape[0] // T
    Cblk = _pick_cblk(C)
    kern = functools.partial(_flrelu_kernel, slope=float(slope), gain=float(gain),
                             clamp=float(clamp), taps=int(T), ho=int(ho), hop=int(Hop))
    return pl.pallas_call(
        kern,
        out_shape=jax.ShapeDtypeStruct((B, C, ho, Wo), jnp.float32),
        grid=(B, C // Cblk),
        in_specs=[
            pl.BlockSpec((Cblk, 1, 1), lambda b, c: (c, 0, 0)),
            pl.BlockSpec((None, Cblk, Hc, Wc), lambda b, c: (b, c, 0, 0)),
            pl.BlockSpec((Hu, Hc), lambda b, c: (0, 0)),
            pl.BlockSpec((Wc, Wu), lambda b, c: (0, 0)),
            pl.BlockSpec((T * Hop, Hu), lambda b, c: (0, 0)),
            pl.BlockSpec((T, Wu, Wo), lambda b, c: (0, 0, 0)),
        ],
        out_specs=pl.BlockSpec((None, Cblk, ho, Wo), lambda b, c: (b, c, 0, 0)),
        compiler_params=pltpu.CompilerParams(
            dimension_semantics=("parallel", "parallel")),
    )(bias.reshape(C, 1, 1), x, uh, uwT, dh_stack, dwT)


# ----------------------------------------------------------------------------------
# forward-pass glue
# ----------------------------------------------------------------------------------
def modulated_conv(x, s, weight, scale, demod, padding, input_gain):
    """Grouped per-sample modulated conv (PyTorch ModulatedConv semantics)."""
    # TODO(synk): fuse the im2col into the bmm kernel (k*k shifted in-VMEM slices) to
    #             avoid materializing the k^2-expanded patch tensor in HBM.
    B, Cin, H, W = x.shape
    Cout, _, k, _ = weight.shape
    w = weight[None] * s[:, None, :, None, None] * scale            # (B, Cout, Cin, k, k)
    if demod:
        d = jax.lax.rsqrt(jnp.sum(jnp.square(w), axis=(2, 3, 4)) + 1e-8)
        w = w * d[:, :, None, None, None]
    w = w * jnp.float32(input_gain)                                  # ema.rsqrt() == 1 (eval)
    p = padding
    Ho = H + 2 * p - k + 1
    Wo = W + 2 * p - k + 1
    xp = jnp.pad(x, ((0, 0), (0, 0), (p, p), (p, p)))
    cols = []
    for ki in range(k):
        for kj in range(k):
            cols.append(xp[:, :, ki:ki + Ho, kj:kj + Wo])            # (B, Cin, Ho, Wo)
    patches = jnp.stack(cols, axis=1)                                # (B, k*k, Cin, Ho, Wo)
    patches = jnp.transpose(patches, (0, 3, 4, 1, 2)).reshape(B, Ho * Wo, k * k * Cin)
    wm = jnp.transpose(w, (0, 3, 4, 2, 1)).reshape(B, k * k * Cin, Cout)
    out = pallas_bmm_tiled(patches, wm)                              # (B, Ho*Wo, Cout) f32
    return jnp.transpose(out.reshape(B, Ho, Wo, Cout), (0, 3, 1, 2))


def synthesis_input_forward(ip, w):
    B = w.shape[0]
    C = ip['channels']
    W0, H0 = ip['size'][0], ip['size'][1]
    sr, bw = ip['sampling_rate'], ip['bandwidth']
    t = pallas_linear(w, ip['aff_w_t'], ip['aff_b'])                 # (B, 4)
    t = t / jnp.linalg.norm(t[:, :2], axis=1, keepdims=True)
    eye3 = jnp.eye(3, dtype=jnp.float32)
    m_r = jnp.tile(eye3[None], (B, 1, 1))
    m_r = m_r.at[:, 0, 0].set(t[:, 0]).at[:, 0, 1].set(-t[:, 1])
    m_r = m_r.at[:, 1, 0].set(t[:, 1]).at[:, 1, 1].set(t[:, 0])
    m_t = jnp.tile(eye3[None], (B, 1, 1))
    m_t = m_t.at[:, 0, 2].set(-t[:, 2]).at[:, 1, 2].set(-t[:, 3])
    transforms = m_r @ m_t @ eye3[None]
    freqs = ip['freqs'][None]                                        # (1, C, 2)
    phases = ip['phases'][None] + jnp.squeeze(freqs @ transforms[:, :2, 2:], axis=2)
    freqs = freqs @ transforms[:, :2, :2]                            # (B, C, 2)
    amp = jnp.clip(1 - (jnp.linalg.norm(freqs, axis=2) - bw) / (sr / 2 - bw), 0.0, 1.0)
    freqs_bc = jnp.transpose(freqs, (0, 2, 1))                       # (B, 2, C)
    out = pallas_fourier(ip['coords'], freqs_bc, phases[:, None, :],
                         amp[:, None, :], ip['weight_t'])            # (B, H*W, C)
    return jnp.transpose(out.reshape(B, H0, W0, C), (0, 3, 1, 2))


def style_layer_forward(lp, x, w):
    s = pallas_linear(w, lp['aff_w_t'], lp['aff_b'])                 # (B, Cin)
    x = modulated_conv(x, s, lp['conv_w'], lp['conv_scale'], lp['demod'],
                       lp['conv_pad'], input_gain=1.0)
    x = pallas_filtered_lrelu(x, lp['bias'], lp['uh'], lp['uwT'],
                              lp['dh_stack'], lp['dwT'],
                              lp['slope'], lp['gain'], lp['clamp'], lp['ho'])
    return x


def synthesis_forward(params, w):
    if w.ndim == 2:
        ws = [w] * params['num_ws']
    else:
        ws = [w[:, i] for i in range(w.shape[1])]
    x = synthesis_input_forward(params['input'], ws[0])
    for lp, wi in zip(params['layers'], ws[1:]):
        x = style_layer_forward(lp, x, wi)
    return x * params['output_scale']


# ----------------------------------------------------------------------------------
# deterministic parameter construction (mirrors the module __init__)
# ----------------------------------------------------------------------------------
def build_synthesis(key, image_size=16, num_layers=4, channels=4, max_channels=16,
                    style_dim=32, image_channels=3, output_scale=0.25, margin_size=10,
                    first_cutoff=2, first_stopband=2 ** 2.1, last_stopband_rel=2 ** 0.3,
                    kernel_size=3, lrelu_sampling=2, filter_size=6, conv_clamp=256):
    num_ws = num_layers + 2
    log_resl_diff = int(math.log2(512) - math.log2(image_size))
    min_c_scale = channels / 64
    ch0 = int(2 ** (15 - log_resl_diff) * min_c_scale)
    chans, sizes, rates, cutoffs, half_widths = get_layer_params(
        image_size, num_layers, ch0, max_channels, image_channels, margin_size,
        first_cutoff, first_stopband, last_stopband_rel, num_critical=2)

    keys = jax.random.split(key, 3 + 2 * (num_layers + 1))

    # ---- SynthesisInput ----
    C0 = int(chans[0])
    size0 = [int(sizes[0]), int(sizes[0])]
    sr0, bw0 = float(rates[0]), float(cutoffs[0])
    freqs = jax.random.normal(keys[0], (C0, 2), dtype=jnp.float32)
    radii = jnp.sqrt(jnp.sum(freqs ** 2, axis=1, keepdims=True))
    freqs = freqs / (radii * jnp.exp(radii ** 2) ** 0.25)
    freqs = freqs * bw0
    phases = jax.random.uniform(keys[1], (C0,), dtype=jnp.float32) - 0.5
    in_weight = jax.random.normal(keys[2], (C0, C0), dtype=jnp.float32)
    aff_w = jnp.zeros((4, style_dim), jnp.float32)                   # affine.weight.fill_(0)
    aff_b = jnp.array([1.0, 0.0, 0.0, 0.0], jnp.float32)             # affine.bias = [1,0,0,0]
    W0, H0 = size0[0], size0[1]
    jx = (2 * (np.arange(W0) + 0.5) / W0 - 1) * (0.5 * W0 / sr0)     # F.affine_grid, align_corners=False
    iy = (2 * (np.arange(H0) + 0.5) / H0 - 1) * (0.5 * H0 / sr0)
    gx, gy = np.meshgrid(jx, iy)
    coords = np.stack([gx, gy], axis=-1).reshape(H0 * W0, 2).astype(np.float32)
    input_params = dict(
        channels=C0, size=size0, sampling_rate=sr0, bandwidth=bw0,
        freqs=freqs, phases=phases,
        weight_t=(in_weight * (1.0 / C0 ** 0.5)).T,
        aff_w_t=(aff_w * (1.0 / style_dim ** 0.5)).T, aff_b=aff_b,
        coords=jnp.asarray(coords),
    )

    # ---- StyleLayers ----
    layers = []
    kidx = 3
    for i in range(num_layers + 1):
        prev = max(i - 1, 0)
        is_rgb = (i == num_layers)
        is_crit = (i >= num_layers - 2)
        in_c, out_c = int(chans[prev]), int(chans[i])
        ksz = 1 if is_rgb else kernel_size
        in_size, out_size = int(sizes[prev]), int(sizes[i])
        in_sr, out_sr = float(rates[prev]), float(rates[i])
        in_cut, out_cut = float(cutoffs[prev]), float(cutoffs[i])
        in_hw, out_hw = float(half_widths[prev]), float(half_widths[i])

        gain = 1.0 if is_rgb else 2 ** 0.5
        slope = 1.0 if is_rgb else 0.2
        tmp_sr = max(in_sr, out_sr) * (1 if is_rgb else lrelu_sampling)
        up = int(np.rint(tmp_sr / in_sr))
        up_taps = filter_size * up if (up > 1 and not is_rgb) else 1
        fu = design_filter(up_taps, in_cut, in_hw * 2, tmp_sr)
        down = int(np.rint(tmp_sr / out_sr))
        down_taps = filter_size * down if (down > 1 and not is_rgb) else 1
        fd = design_filter(down_taps, out_cut, out_hw * 2, tmp_sr, not is_crit)

        in_sz = np.broadcast_to(np.asarray(in_size), [2])
        out_sz = np.broadcast_to(np.asarray(out_size), [2])
        pad_total = (out_sz - 1) * down + 1
        pad_total = pad_total - (in_sz + ksz - 1) * up
        pad_total = pad_total + up_taps + down_taps - 2
        pad_lo = (pad_total + up) // 2
        pad_hi = pad_total - pad_lo
        px0, px1, py0, py1 = int(pad_lo[0]), int(pad_hi[0]), int(pad_lo[1]), int(pad_hi[1])

        Hc = in_size + ksz - 1            # modulated conv output (padding = ksz - 1)
        Wc = in_size + ksz - 1

        fu1 = fu if fu is not None else np.ones([1])
        uh = _upfirdn1d_matrix(Hc, fu1, up, 1, py0, py1, float(up))
        mw = _upfirdn1d_matrix(Wc, fu1, up, 1, px0, px1, float(up))
        Hu, Wu = uh.shape[0], mw.shape[0]
        if fd is None or np.asarray(fd).ndim == 1:
            fd1 = fd if fd is not None else np.ones([1])
            dh = _upfirdn1d_matrix(Hu, fd1, 1, down, 0, 0, 1.0)[None]      # (1, Ho, Hu)
            dwT = _upfirdn1d_matrix(Wu, fd1, 1, down, 0, 0, 1.0).T[None]   # (1, Wu, Wo)
        else:
            dh, dwT = _downfir2d_matrices(Hu, Wu, fd, down)                # (T,Ho,Hu),(T,Wu,Wo)
        T_, Ho_, _ = dh.shape
        assert Ho_ == out_size and dwT.shape[2] == out_size

        # Stack the H-side tap operators with Ho rounded up to a multiple of 8 so the
        # in-kernel per-tap slices are sublane-aligned (padded rows are zero).
        Hop = ((Ho_ + 7) // 8) * 8
        dh_stack = np.zeros((T_ * Hop, Hu), np.float64)
        for ti in range(T_):
            dh_stack[ti * Hop: ti * Hop + Ho_] = dh[ti]

        aff_w = jax.random.normal(keys[kidx], (in_c, style_dim), jnp.float32); kidx += 1
        conv_w = jax.random.normal(keys[kidx], (out_c, in_c, ksz, ksz), jnp.float32); kidx += 1

        layers.append(dict(
            in_c=in_c, out_c=out_c, k=ksz, conv_pad=ksz - 1, demod=(not is_rgb),
            aff_w_t=(aff_w * (1.0 / style_dim ** 0.5)).T,
            aff_b=jnp.ones((in_c,), jnp.float32),                    # affine.bias.fill_(1)
            conv_w=conv_w, conv_scale=1.0 / (in_c * ksz * ksz) ** 0.5,
            bias=jnp.zeros((out_c,), jnp.float32),
            uh=jnp.asarray(uh, jnp.float32), uwT=jnp.asarray(mw.T, jnp.float32),
            dh_stack=jnp.asarray(dh_stack, jnp.float32),
            dwT=jnp.asarray(dwT, jnp.float32),
            ho=int(Ho_),
            slope=slope, gain=gain, clamp=float(conv_clamp),
        ))

    # TODO(synk): training-time EMA buffer update (x.square().mean() lerp) is skipped — eval mode only.
    return dict(input=input_params, layers=layers,
                output_scale=float(output_scale), num_ws=num_ws, style_dim=style_dim)


# ----------------------------------------------------------------------------------
if __name__ == "__main__":
    key = jax.random.PRNGKey(0)
    pkey, wkey = jax.random.split(key)
    params = build_synthesis(pkey, image_size=16, num_layers=4, channels=4,
                             max_channels=16, style_dim=32)
    B = 2
    w = jax.random.normal(wkey, (B, params['style_dim']), dtype=jnp.float32)
    out = synthesis_forward(params, w)
    out = jax.block_until_ready(out)
    assert out.shape == (B, 3, 16, 16), out.shape
    assert bool(jnp.all(jnp.isfinite(out)))
    print("KERNEL_OK")
</pallas_src>

<mosaic_0001>
module attributes {stable_mosaic.version = 11 : i64} {
  func.func @_linear_kernel(%arg0: memref<2x32xf32, #tpu.memory_space<vmem>>, %arg1: memref<32x4xf32, #tpu.memory_space<vmem>>, %arg2: memref<1x4xf32, #tpu.memory_space<vmem>>, %arg3: memref<2x4xf32, #tpu.memory_space<vmem>>) attributes {dimension_semantics = [], scalar_prefetch = 0 : i64, scratch_operands = 0 : i64, tpu.core_type = #tpu.core_type<tc>} {
    %c0 = arith.constant 0 : index
    %c0_0 = arith.constant 0 : index
    %0 = vector.load %arg0[%c0, %c0_0] : memref<2x32xf32, #tpu.memory_space<vmem>>, vector<2x32xf32>
    %c0_1 = arith.constant 0 : index
    %c0_2 = arith.constant 0 : index
    %1 = vector.load %arg1[%c0_1, %c0_2] : memref<32x4xf32, #tpu.memory_space<vmem>>, vector<32x4xf32>
    %cst = arith.constant dense<0.000000e+00> : vector<2x4xf32>
    %2 = tpu.matmul %0, %1, %cst {dimension_numbers = #tpu.dot_dimension_numbers<[1], [0], [0], [1], [0, 0, 1, 1], [], []>} : vector<2x32xf32>, vector<32x4xf32>, vector<2x4xf32> -> vector<2x4xf32>
    %c0_3 = arith.constant 0 : index
    %c0_4 = arith.constant 0 : index
    %3 = vector.load %arg2[%c0_3, %c0_4] : memref<1x4xf32, #tpu.memory_space<vmem>>, vector<1x4xf32>
    %4 = vector.broadcast %3 : vector<1x4xf32> to vector<2x4xf32>
    %5 = arith.addf %2, %4 : vector<2x4xf32>
    %c0_5 = arith.constant 0 : index
    %c0_6 = arith.constant 0 : index
    %6 = vector.load %arg3[%c0_5, %c0_6] : memref<2x4xf32, #tpu.memory_space<vmem>>, vector<2x4xf32>
    tpu.vector_store %arg3[%c0_5, %c0_6], %5 {strides = array<i32>} : memref<2x4xf32, #tpu.memory_space<vmem>>, vector<2x4xf32>,
    return
  }
}

</mosaic_0001>

<llo_original>
// kernel: tpu_custom_call.1
$region0: #{tpu_custom_call.1}
  #allocation0 [shape = 'u32[]', space=smem, size = 0x4, offset = 0x4, fixed_abs, tag = 'smem constant byte address 0x4 - core index']
  #allocation1 [shape = 'u32[144,128]{1,0:T(1,128)}', space=vmem, size = 0x12000, scoped, tag = 'internal scratch']
  %s0 = inlined_call_operand.vmem [shape: f32[2,32], index: 0, kind: input, shape index: {}]
  %s1 = inlined_call_operand.vmem [shape: f32[32,4], index: 1, kind: input, shape index: {}]
  %s2 = inlined_call_operand.vmem [shape: f32[1,4], index: 2, kind: input, shape index: {}]
  %s3 = inlined_call_operand.hbm [shape: f32[2,4], index: 3, kind: output, shape index: {}]
  %s4 = sld [smem:[#allocation0]]
  $region22: #{tpu_custom_call.1} parent=0
    _
  %s6 = ssub.s32 1, %s4
  %s7 = scalar_select 0, %s6, %s4
  $region1: #{tpu_custom_call.1} parent=0
    #allocation2 [shape = 'u8[1024]{0}', space=vmem, size = 0x400, scoped, tag = 'output window, operand 0, single buffered']
    #allocation3 [shape = 's32[1]{0}', space=sflag, size = 0x4, scoped, tag = 'scoped memory for tpu_custom_call.1']
    %8 = vsyncpa [#allocation3], 0
    // Predicated region
    $region2: #{tpu_custom_call.1} parent=1 // pred_check
      _
    $region3: #{tpu_custom_call.1} parent=1 // pred_check_branch
      %10 = sbr.rel (0) target = $region5
    $region4: #{tpu_custom_call.1} parent=1 // pred_region
      _
    $region5: #{tpu_custom_call.1} parent=1 // pred_fallthru
      _
    // Predicated region
    $region6: #{tpu_custom_call.1} parent=1 // pred_check
      _
    $region7: #{tpu_custom_call.1} parent=1 // pred_check_branch
      %12 = sbr.rel (0) target = $region9
    $region8: #{tpu_custom_call.1} parent=1 // pred_region
      _
    $region9: #{tpu_custom_call.1} parent=1 // pred_fallthru
      _
    // Predicated region
    $region10: #{tpu_custom_call.1} parent=1 // pred_check
      _
    $region11: #{tpu_custom_call.1} parent=1 // pred_check_branch
      %14 = sbr.rel (0) target = $region13
    $region12: #{tpu_custom_call.1} parent=1 // pred_region
      _
    $region13: #{tpu_custom_call.1} parent=1 // pred_fallthru
      _
    %v15 = vld [vmem:[%s0] sm:$0x3]
    %v16 = vld [vmem:[%s1] sm:$0xff]
    %v17 = vld [vmem:[%s1 + $0x8] sm:$0xff]
    %v18 = vld [vmem:[%s1 + $0x10] sm:$0xff]
    %v19 = vld [vmem:[%s1 + $0x18] sm:$0xff]
    %v20 = vld [vmem:[%s2] sm:$0x1]
    %v22 = vlaneseq
    %v23 = vshrl.u32 %v22, 7
    %v24 = vsub.s32 0, %v23
    %v25 = vrot.slane %v20, %v24
    %vm27 = vcmask 261120
    %v29 = vsel %vm27, %v15, 0
    %31 = vmatprep.subr.mxu0 0.0
    %32 = vmatpush1.msra.mxu0 %v16
    %33 = vmatprep.subr.mxu0 0.0
    %34 = vmatpush1.msra.mxu0 %v17
    %35 = vmatprep.subr.mxu0 0.0
    %36 = vmatpush1.msra.mxu0 %v18
    %37 = vmatprep.subr.mxu0 0.0
    %38 = vmatpush1.msra.mxu0 %v19
    %39 = vmatprep.subr.mxu0 0.0
    %40 = vmatpush1.msra.mxu0 0.0
    %41 = vmatprep.subr.mxu0 0.0
    %42 = vmatpush1.msra.mxu0 0.0
    %43 = vmatprep.subr.mxu0 0.0
    %44 = vmatpush1.msra.mxu0 0.0
    %45 = vmatprep.subr.mxu0 0.0
    %46 = vmatpush1.msra.mxu0 0.0
    %47 = vmatprep.subr.mxu0 0.0
    %48 = vmatpush1.msra.mxu0 0.0
    %49 = vmatprep.subr.mxu0 0.0
    %50 = vmatpush1.msra.mxu0 0.0
    %51 = vmatprep.subr.mxu0 0.0
    %52 = vmatpush1.msra.mxu0 0.0
    %53 = vmatprep.subr.mxu0 0.0
    %54 = vmatpush1.msra.mxu0 0.0
    %55 = vmatprep.subr.mxu0 0.0
    %56 = vmatpush1.msra.mxu0 0.0
    %57 = vmatprep.subr.mxu0 0.0
    %58 = vmatpush1.msra.mxu0 0.0
    %59 = vmatprep.subr.mxu0 0.0
    %60 = vmatpush1.msra.mxu0 0.0
    %61 = vmatprep.subr.mxu0 0.0
    %62 = vmatpush1.msra.mxu0 0.0
    %63 = vmatprep.subr.mxu0 0.0
    %64 = vmatpush1.msra.mxu0 0.0
    %65 = vmatprep.subr.mxu0 0.0
    %66 = vmatpush1.msra.mxu0 0.0
    %67 = vmatprep.subr.mxu0 0.0
    %68 = vmatpush1.msra.mxu0 0.0
    %69 = vmatprep.subr.mxu0 0.0
    %70 = vmatpush1.msra.mxu0 0.0
    %71 = vmatprep.subr.mxu0 0.0
    %72 = vmatpush1.msra.mxu0 0.0
    %73 = vmatprep.subr.mxu0 0.0
    %74 = vmatpush1.msra.mxu0 0.0
    %75 = vmatprep.subr.mxu0 0.0
    %76 = vmatpush1.msra.mxu0 0.0
    %77 = vmatprep.subr.mxu0 0.0
    %78 = vmatpush1.msra.mxu0 0.0
    %79 = vmatprep.subr.mxu0 0.0
    %80 = vmatpush1.msra.mxu0 0.0
    %81 = vmatprep.subr.mxu0 0.0
    %82 = vmatpush1.msra.mxu0 0.0
    %83 = vmatprep.subr.mxu0 0.0
    %84 = vmatpush1.msra.mxu0 0.0
    %85 = vmatprep.subr.mxu0 0.0
    %86 = vmatpush1.msra.mxu0 0.0
    %87 = vmatprep.subr.mxu0 0.0
    %88 = vmatpush1.msra.mxu0 0.0
    %89 = vmatprep.subr.mxu0 0.0
    %90 = vmatpush1.msra.mxu0 0.0
    %91 = vmatprep.subr.mxu0 0.0
    %92 = vmatpush1.msra.mxu0 0.0
    %93 = vmatprep.subr.mxu0 0.0
    %94 = vmatpush1.msra.mxu0 0.0
    %95 = vmatprep.mubr.f32.mxu0 0.0
    %96 = vmatmul.mubr.f32.gmra.mrb[0].mxu0 %v29
    %v97 = vpop.f32.mrb[0].mxu0
    %v98 = vadd.f32 %v25, %v97
    %v99 = vpop.f32.mrb[0].mxu0
    %100 = vdwg.mxu0
    %vm101 = vcmask 25600
    %102 = vst.msk [vmem:[#allocation2] sm:$0x3] %vm101, %v98
    // Predicated region
    $region14: #{tpu_custom_call.1} parent=1 // pred_check
      _
    $region15: #{tpu_custom_call.1} parent=1 // pred_check_branch
      %104 = sbr.rel (0) target = $region17
    $region16: #{tpu_custom_call.1} parent=1 // pred_region
      %s106 = ssub.s32 32, 32
      %107 = vsyncadd [#allocation3], %s106
      %s109 = sshll.u32 [#allocation2], 4
      %s110 = int_to_ptr.vmem [resolvable:$true] %s109
      %112 = dma.vmem_to_hbm [thread:$0]  %s110, 32, %s3, [#allocation3]
    $region17: #{tpu_custom_call.1} parent=1 // pred_fallthru
      _
    // Predicated region
    $region18: #{tpu_custom_call.1} parent=1 // pred_check
      _
    $region19: #{tpu_custom_call.1} parent=1 // pred_check_branch
      %114 = sbr.rel (0) target = $region21
    $region20: #{tpu_custom_call.1} parent=1 // pred_region
      %115 = dma.done [#allocation3], 32
    $region21: #{tpu_custom_call.1} parent=1 // pred_fallthru
      _
    %116 = vsyncpa [#allocation3], 1

</llo_original>
